<compile_context>
chip_gen: v6e
topology: v6e:2x2x1
jax: 0.10.0
libtpu: 0.0.40
codegen_flags: <defaults>
</compile_context>

<pallas_src>
import functools
import math

import jax
import jax.numpy as jnp
from jax.experimental import pallas as pl
from jax.experimental.pallas import tpu as pltpu


# ----------------------------------------------------------------------------
# Fused Pallas kernel: split -> angle embedding -> MLP -> output concat.
# ----------------------------------------------------------------------------
def _node_rt_kernel(x_ref, w_ref, b_ref, out_ref, *,
                    m, n, d_f, u_index, embedding, layer_dims, col_offsets):
    x = x_ref[...].astype(jnp.float32)                     # [TB, 3*d_f]

    q = x[:, 0:d_f]
    q_dot = x[:, d_f:2 * d_f]
    tau_u = x[:, 2 * d_f + u_index: 2 * d_f + u_index + 1]  # [TB, 1]

    if embedding:
        r = q[:, :m]
        theta = q[:, m:]
        # cos/sin run on the EUP slot (otherwise idle here).
        q = jnp.concatenate((r, jnp.cos(theta), jnp.sin(theta)), axis=1)

    h = jnp.concatenate((q, q_dot, tau_u), axis=1)          # [TB, params]

    num_linears = len(layer_dims)
    for i, (din, dout) in enumerate(layer_dims):
        off = col_offsets[i]
        w = w_ref[0:din, off:off + dout]                    # static slice of the slab
        b = b_ref[0:1, off:off + dout]
        h = jnp.dot(h, w, preferred_element_type=jnp.float32) + b
        if i < num_linears - 1:
            h = jnp.tanh(h)                                 # hidden activation (EUP)

    du_dt = jnp.zeros_like(q_dot)
    out = jnp.concatenate((q_dot, h, du_dt), axis=1)        # [TB, 3*d_f]
    out_ref[...] = out.astype(out_ref.dtype)


def node_rt_forward(x, w_slab, b_slab, *, m, n, u_index, embedding,
                    layer_dims, col_offsets, batch_tile=512):
    """Fused NODE_RT forward.  x: [B, 3*d_f] -> dx/dt: [B, 3*d_f]."""
    B, F = x.shape
    d_f = m + n
    assert F == 3 * d_f, (F, d_f)

    # Batch tile: whole batch if small, else a multiple-of-8 tile (pipelined grid).
    if B <= batch_tile:
        tb = B
    else:
        tb = (batch_tile // 8) * 8
    grid = (pl.cdiv(B, tb),)

    kernel = functools.partial(
        _node_rt_kernel, m=m, n=n, d_f=d_f, u_index=u_index, embedding=embedding,
        layer_dims=tuple(layer_dims), col_offsets=tuple(col_offsets))

    return pl.pallas_call(
        kernel,
        out_shape=jax.ShapeDtypeStruct((B, F), x.dtype),
        grid_spec=pltpu.PrefetchScalarGridSpec(
            num_scalar_prefetch=0,
            grid=grid,
            in_specs=[
                pl.BlockSpec((tb, F), lambda i: (i, 0)),            # state tile
                pl.BlockSpec(w_slab.shape, lambda i: (0, 0)),       # weight slab, resident
                pl.BlockSpec(b_slab.shape, lambda i: (0, 0)),       # bias row, resident
            ],
            out_specs=pl.BlockSpec((tb, F), lambda i: (i, 0)),
        ),
        compiler_params=pltpu.CompilerParams(
            dimension_semantics=("parallel",)),                     # v7x: both TCs
    )(x, w_slab, b_slab)


# ----------------------------------------------------------------------------
# NODE_RT module (forward pass) in JAX, calling the fused Pallas kernel.
# ----------------------------------------------------------------------------
class NodeRTPallas:
    def __init__(self, m, n, n_layers, n_neurons, u_index, *, key, embedding=True):
        self.m = m
        self.n = n
        self.d_f = m + n
        self.u_index = u_index
        self.embedding = embedding

        params = m + 2 * n + self.d_f + 1   # MLP input size
        output_size = self.d_f

        # Deterministic init (torch.nn.Linear-style uniform(-1/sqrt(fan_in), +)).
        dims = [params] + [n_neurons] * n_layers + [output_size]
        self.layer_dims = [(dims[i], dims[i + 1]) for i in range(len(dims) - 1)]
        self.weights, self.biases = [], []
        for fan_in, fan_out in self.layer_dims:
            key, kw, kb = jax.random.split(key, 3)
            bound = 1.0 / math.sqrt(fan_in)
            self.weights.append(
                jax.random.uniform(kw, (fan_in, fan_out), jnp.float32, -bound, bound))
            self.biases.append(
                jax.random.uniform(kb, (fan_out,), jnp.float32, -bound, bound))

        # Pack all layers into one zero-padded weight slab + one bias row.
        max_in = max(din for din, _ in self.layer_dims)
        total_out = sum(dout for _, dout in self.layer_dims)
        w_slab = jnp.zeros((max_in, total_out), jnp.float32)
        b_slab = jnp.zeros((1, total_out), jnp.float32)
        off = 0
        self.col_offsets = []
        for (din, dout), w, b in zip(self.layer_dims, self.weights, self.biases):
            w_slab = w_slab.at[0:din, off:off + dout].set(w)
            b_slab = b_slab.at[0:1, off:off + dout].set(b.reshape(1, -1))
            self.col_offsets.append(off)
            off += dout
        self.w_slab = w_slab
        self.b_slab = b_slab

    # -------- Pallas forward (single fused kernel) --------
    def forward(self, t, x):
        del t
        return node_rt_forward(
            x, self.w_slab, self.b_slab,
            m=self.m, n=self.n, u_index=self.u_index, embedding=self.embedding,
            layer_dims=self.layer_dims, col_offsets=self.col_offsets)

    # -------- Pure-JAX reference of the same forward (correctness check) --------
    def angle_embedding(self, q):
        r = q[:, : self.m]
        theta = q[:, self.m:]
        return jnp.concatenate((r, jnp.cos(theta), jnp.sin(theta)), axis=1)

    def forward_ref(self, t, x):
        del t
        d = self.d_f
        q = x[:, 0 * d: 1 * d]
        q_dot = x[:, 1 * d: 2 * d]
        tau = x[:, 2 * d: 3 * d]
        if self.embedding:
            q = self.angle_embedding(q)
        h = jnp.concatenate((q, q_dot, tau[:, self.u_index][:, None]), axis=1)
        for i, (w, b) in enumerate(zip(self.weights, self.biases)):
            h = h @ w + b
            if i < len(self.weights) - 1:
                h = jnp.tanh(h)
        return jnp.concatenate((q_dot, h, jnp.zeros_like(q_dot)), axis=1)


# ----------------------------------------------------------------------------
if __name__ == "__main__":
    # Cartpole-like setup: m=1 translational coord, n=1 angle -> d_f = 2,
    # state x is [batch, 3*d_f] = [q, q_dot, tau].
    m, n = 1, 1
    n_layers, n_neurons = 2, 32
    u_index = 0
    batch = 8
    d_f = m + n

    key = jax.random.PRNGKey(0)
    key, k_model, k_x = jax.random.split(key, 3)

    model = NodeRTPallas(m, n, n_layers, n_neurons, u_index, key=k_model)

    x = jax.random.normal(k_x, (batch, 3 * d_f), jnp.float32)
    t = jnp.float32(0.0)

    out = jax.block_until_ready(model.forward(t, x))
    ref = jax.block_until_ready(model.forward_ref(t, x))

    assert out.shape == (batch, 3 * d_f), out.shape
    assert jnp.allclose(out, ref, atol=1e-5, rtol=1e-5), (out, ref)
    print("KERNEL_OK")
</pallas_src>

<mosaic_0001>
module attributes {stable_mosaic.version = 11 : i64} {
  func.func @_node_rt_kernel(%arg0: i32, %arg1: memref<8x6xf32, #tpu.memory_space<vmem>>, %arg2: memref<32x66xf32, #tpu.memory_space<vmem>>, %arg3: memref<1x66xf32, #tpu.memory_space<vmem>>, %arg4: memref<8x6xf32, #tpu.memory_space<vmem>>) attributes {dimension_semantics = [#tpu.dimension_semantics<parallel>], iteration_bounds = array<i64: 1>, scalar_prefetch = 0 : i64, scratch_operands = 0 : i64, tpu.core_type = #tpu.core_type<tc>, window_params = [{transform_indices = @transform_0, window_bounds = array<i64: 8, 6>}, {pipeline_mode = #tpu.pipeline_mode<synchronous>, transform_indices = @transform_1, window_bounds = array<i64: 32, 66>}, {pipeline_mode = #tpu.pipeline_mode<synchronous>, transform_indices = @transform_2, window_bounds = array<i64: 1, 66>}, {transform_indices = @transform_3, window_bounds = array<i64: 8, 6>}]} {
    %c0 = arith.constant 0 : index
    %c0_0 = arith.constant 0 : index
    %0 = vector.load %arg1[%c0, %c0_0] : memref<8x6xf32, #tpu.memory_space<vmem>>, vector<8x6xf32>
    %1 = vector.extract_strided_slice %0 {offsets = [0, 0], sizes = [8, 2], strides = [1, 1]} : vector<8x6xf32> to vector<8x2xf32>
    %2 = vector.extract_strided_slice %0 {offsets = [0, 2], sizes = [8, 2], strides = [1, 1]} : vector<8x6xf32> to vector<8x2xf32>
    %3 = vector.extract_strided_slice %0 {offsets = [0, 4], sizes = [8, 1], strides = [1, 1]} : vector<8x6xf32> to vector<8x1xf32>
    %4 = vector.extract_strided_slice %1 {offsets = [0, 0], sizes = [8, 1], strides = [1, 1]} : vector<8x2xf32> to vector<8x1xf32>
    %5 = vector.extract_strided_slice %1 {offsets = [0, 1], sizes = [8, 1], strides = [1, 1]} : vector<8x2xf32> to vector<8x1xf32>
    %6 = math.cos %5 : vector<8x1xf32>
    %7 = math.sin %5 : vector<8x1xf32>
    %8 = tpu.concatenate %4, %6, %7 in 1 : vector<8x1xf32>, vector<8x1xf32>, vector<8x1xf32> -> vector<8x3xf32>
    %9 = tpu.concatenate %8, %2, %3 in 1 : vector<8x3xf32>, vector<8x2xf32>, vector<8x1xf32> -> vector<8x6xf32>
    %c0_1 = arith.constant 0 : index
    %c0_2 = arith.constant 0 : index
    %10 = vector.load %arg2[%c0_1, %c0_2] : memref<32x66xf32, #tpu.memory_space<vmem>>, vector<6x32xf32>
    %c0_3 = arith.constant 0 : index
    %c0_4 = arith.constant 0 : index
    %11 = vector.load %arg3[%c0_3, %c0_4] : memref<1x66xf32, #tpu.memory_space<vmem>>, vector<1x32xf32>
    %cst = arith.constant dense<0.000000e+00> : vector<8x32xf32>
    %12 = tpu.matmul %9, %10, %cst {dimension_numbers = #tpu.dot_dimension_numbers<[1], [0], [0], [1], [0, 0, 1, 1], [], []>} : vector<8x6xf32>, vector<6x32xf32>, vector<8x32xf32> -> vector<8x32xf32>
    %13 = vector.broadcast %11 : vector<1x32xf32> to vector<8x32xf32>
    %14 = arith.addf %12, %13 : vector<8x32xf32>
    %15 = math.tanh %14 : vector<8x32xf32>
    %c0_5 = arith.constant 0 : index
    %c32 = arith.constant 32 : index
    %16 = vector.load %arg2[%c0_5, %c32] : memref<32x66xf32, #tpu.memory_space<vmem>>, vector<32x32xf32>
    %c0_6 = arith.constant 0 : index
    %c32_7 = arith.constant 32 : index
    %17 = vector.load %arg3[%c0_6, %c32_7] : memref<1x66xf32, #tpu.memory_space<vmem>>, vector<1x32xf32>
    %cst_8 = arith.constant dense<0.000000e+00> : vector<8x32xf32>
    %18 = tpu.matmul %15, %16, %cst_8 {dimension_numbers = #tpu.dot_dimension_numbers<[1], [0], [0], [1], [0, 0, 1, 1], [], []>} : vector<8x32xf32>, vector<32x32xf32>, vector<8x32xf32> -> vector<8x32xf32>
    %19 = vector.broadcast %17 : vector<1x32xf32> to vector<8x32xf32>
    %20 = arith.addf %18, %19 : vector<8x32xf32>
    %21 = math.tanh %20 : vector<8x32xf32>
    %c0_9 = arith.constant 0 : index
    %c64 = arith.constant 64 : index
    %22 = vector.load %arg2[%c0_9, %c64] : memref<32x66xf32, #tpu.memory_space<vmem>>, vector<32x2xf32>
    %c0_10 = arith.constant 0 : index
    %c64_11 = arith.constant 64 : index
    %23 = vector.load %arg3[%c0_10, %c64_11] : memref<1x66xf32, #tpu.memory_space<vmem>>, vector<1x2xf32>
    %cst_12 = arith.constant dense<0.000000e+00> : vector<8x2xf32>
    %24 = tpu.matmul %21, %22, %cst_12 {dimension_numbers = #tpu.dot_dimension_numbers<[1], [0], [0], [1], [0, 0, 1, 1], [], []>} : vector<8x32xf32>, vector<32x2xf32>, vector<8x2xf32> -> vector<8x2xf32>
    %25 = vector.broadcast %23 : vector<1x2xf32> to vector<8x2xf32>
    %26 = arith.addf %24, %25 : vector<8x2xf32>
    %cst_13 = arith.constant 0.000000e+00 : f32
    %27 = vector.broadcast %cst_13 : f32 to vector<8x2xf32>
    %28 = tpu.concatenate %2, %26, %27 in 1 : vector<8x2xf32>, vector<8x2xf32>, vector<8x2xf32> -> vector<8x6xf32>
    %c0_14 = arith.constant 0 : index
    %c0_15 = arith.constant 0 : index
    %29 = vector.load %arg4[%c0_14, %c0_15] : memref<8x6xf32, #tpu.memory_space<vmem>>, vector<8x6xf32>
    tpu.vector_store %arg4[%c0_14, %c0_15], %28 {strides = array<i32>} : memref<8x6xf32, #tpu.memory_space<vmem>>, vector<8x6xf32>,
    return
  }
  func.func @transform_0(%arg0: i32) -> (i32, i32) {
    %c0_i32 = arith.constant 0 : i32
    %c0_i32_0 = arith.constant 0 : i32
    return %arg0, %c0_i32 : i32, i32
  }
  func.func @transform_1(%arg0: i32) -> (i32, i32) {
    %c0_i32 = arith.constant 0 : i32
    %c0_i32_0 = arith.constant 0 : i32
    %c0_i32_1 = arith.constant 0 : i32
    return %c0_i32, %c0_i32_0 : i32, i32
  }
  func.func @transform_2(%arg0: i32) -> (i32, i32) {
    %c0_i32 = arith.constant 0 : i32
    %c0_i32_0 = arith.constant 0 : i32
    %c0_i32_1 = arith.constant 0 : i32
    return %c0_i32, %c0_i32_0 : i32, i32
  }
  func.func @transform_3(%arg0: i32) -> (i32, i32) {
    %c0_i32 = arith.constant 0 : i32
    %c0_i32_0 = arith.constant 0 : i32
    return %arg0, %c0_i32 : i32, i32
  }
}

</mosaic_0001>

<llo_original>
// kernel: tpu_custom_call.1
$region0: #{tpu_custom_call.1}
  #allocation0 [shape = 'u32[]', space=smem, size = 0x4, offset = 0x4, fixed_abs, tag = 'smem constant byte address 0x4 - core index']
  #allocation1 [shape = 'u32[144,128]{1,0:T(1,128)}', space=vmem, size = 0x12000, scoped, tag = 'internal scratch']
  %s0 = inlined_call_operand.hbm [shape: f32[8,6], index: 0, kind: input, shape index: {}]
  %s1 = inlined_call_operand.hbm [shape: f32[32,66], index: 1, kind: input, shape index: {}]
  %s2 = inlined_call_operand.vmem [shape: f32[1,66], index: 2, kind: input, shape index: {}]
  %s3 = inlined_call_operand.hbm [shape: f32[8,6], index: 3, kind: output, shape index: {}]
  %s4 = sld [smem:[#allocation0]]
  $region30: #{tpu_custom_call.1} parent=0
    _
  %s6 = ssub.s32 1, %s4
  %s7 = scalar_select 0, %s6, %s4
  $region1: #{tpu_custom_call.1} parent=0
    #allocation2 [shape = 'u8[4096]{0}', space=vmem, size = 0x1000, scoped, tag = 'input window, operand 0, single buffered']
    #allocation3 [shape = 's32[1]{0}', space=sflag, size = 0x4, scoped, tag = 'scoped memory for tpu_custom_call.1']
    #allocation4 [shape = 's32[1]{0}', space=sflag, size = 0x4, scoped, tag = 'scoped memory for tpu_custom_call.1']
    #allocation5 [shape = 'u8[16384]{0}', space=vmem, size = 0x4000, scoped, tag = 'input window, operand 1, single buffered']
    #allocation6 [shape = 's32[1]{0}', space=sflag, size = 0x4, scoped, tag = 'scoped memory for tpu_custom_call.1']
    #allocation7 [shape = 'u8[4096]{0}', space=vmem, size = 0x1000, scoped, tag = 'output window, operand 0, single buffered']
    %8 = vsyncpa [#allocation3], 0
    %9 = vsyncpa [#allocation6], 0
    %10 = vsyncpa [#allocation4], 0
    // Predicated region
    $region2: #{tpu_custom_call.1} parent=1 // pred_check
      _
    $region3: #{tpu_custom_call.1} parent=1 // pred_check_branch
      %12 = sbr.rel (0) target = $region5
    $region4: #{tpu_custom_call.1} parent=1 // pred_region
      %s14 = ssub.s32 128, 128
      %15 = vsyncadd [#allocation3], %s14
      %s17 = sshll.u32 [#allocation2], 4
      %s18 = int_to_ptr.vmem [resolvable:$true] %s17
      %20 = dma.hbm_to_vmem [thread:$0]  %s0, 128, %s18, [#allocation3]
    $region5: #{tpu_custom_call.1} parent=1 // pred_fallthru
      _
    // Predicated region
    $region6: #{tpu_custom_call.1} parent=1 // pred_check
      _
    $region7: #{tpu_custom_call.1} parent=1 // pred_check_branch
      %22 = sbr.rel (0) target = $region9
    $region8: #{tpu_custom_call.1} parent=1 // pred_region
      %s24 = ssub.s32 512, 512
      %25 = vsyncadd [#allocation6], %s24
      %s26 = sshll.u32 [#allocation5], 4
      %s27 = int_to_ptr.vmem [resolvable:$true] %s26
      %32 = dma.hbm_to_vmem [thread:$0]  %s1, 512, %s27, [#allocation6], 128, 128, 8
    $region9: #{tpu_custom_call.1} parent=1 // pred_fallthru
      _
    // Predicated region
    $region10: #{tpu_custom_call.1} parent=1 // pred_check
      _
    $region11: #{tpu_custom_call.1} parent=1 // pred_check_branch
      %34 = sbr.rel (0) target = $region13
    $region12: #{tpu_custom_call.1} parent=1 // pred_region
      _
    $region13: #{tpu_custom_call.1} parent=1 // pred_fallthru
      _
    // Predicated region
    $region14: #{tpu_custom_call.1} parent=1 // pred_check
      _
    $region15: #{tpu_custom_call.1} parent=1 // pred_check_branch
      %36 = sbr.rel (0) target = $region17
    $region16: #{tpu_custom_call.1} parent=1 // pred_region
      %37 = dma.done [#allocation3], 128
    $region17: #{tpu_custom_call.1} parent=1 // pred_fallthru
      _
    // Predicated region
    $region18: #{tpu_custom_call.1} parent=1 // pred_check
      _
    $region19: #{tpu_custom_call.1} parent=1 // pred_check_branch
      %39 = sbr.rel (0) target = $region21
    $region20: #{tpu_custom_call.1} parent=1 // pred_region
      %40 = dma.done [#allocation6], 512
    $region21: #{tpu_custom_call.1} parent=1 // pred_fallthru
      _
    %v41 = vld [vmem:[#allocation2] sm:$0xff]
    %v42 = vand.u32 2147483647, %v41
    %vm43 = vcmp.le.f32.partialorder %v42, 0.7853982
    %vm44 = vcmp.lt.s32.totalorder %v41, 0
    %v45 = vand.u32 %v41, 2139095040
    %v46 = vshrl.u32 %v45, 23
    %v47 = vsub.s32 %v46, 127
    %v48 = vand.u32 2147483647, %v41
    %v49 = vand.u32 %v48, 8388607
    %v50 = vor.u32 %v49, 8388608
    %v51 = vsub.s32 0, %v50
    %v52 = vadd.s32 %v47, 1
    %vm53 = vcmp.gt.s32.totalorder %v52, 0
    %v54 = vsel %vm53, %v52, 0
    %v55 = vshrl.u32 %v54, 5
    %v56 = vand.u32 %v54, 31
    %v57 = vsub.s32 32, %v56
    %v58 = vshrl.u32 683565275, %v57
    %v59 = vshll.u32 683565275, %v56
    %v60 = vshrl.u32 2475754826, %v57
    %v61 = vor.u32 %v59, %v60
    %v62 = vshll.u32 2475754826, %v56
    %v63 = vshrl.u32 2131351028, %v57
    %v64 = vor.u32 %v62, %v63
    %v65 = vshll.u32 2131351028, %v56
    %v66 = vshrl.u32 2102212464, %v57
    %v67 = vor.u32 %v65, %v66
    %v68 = vshll.u32 2102212464, %v56
    %v69 = vshrl.u32 920167782, %v57
    %v70 = vor.u32 %v68, %v69
    %v71 = vshll.u32 920167782, %v56
    %v72 = vshrl.u32 1326507024, %v57
    %v73 = vor.u32 %v71, %v72
    %vm74 = vcmp.lt.s32.totalorder %v55, 1
    %vm75 = vcmp.lt.s32.totalorder %v55, 2
    %vm76 = vcmp.lt.s32.totalorder %v55, 3
    %vm77 = vcmp.lt.s32.totalorder %v55, 4
    %v78 = vsel %vm74, %v58, %v61
    %v79 = vsel %vm77, %v67, 2102212464
    %v80 = vsel %vm76, %v64, %v79
    %v81 = vsel %vm75, %v78, %v80
    %v82 = vsel %vm74, %v61, %v64
    %v83 = vsel %vm77, %v70, 920167782
    %v84 = vsel %vm76, %v67, %v83
    %v85 = vsel %vm75, %v82, %v84
    %v86 = vsel %vm74, %v64, %v67
    %v87 = vsel %vm77, %v73, 1326507024
    %v88 = vsel %vm76, %v70, %v87
    %v89 = vsel %vm75, %v86, %v88
    %v90 = vshll.u32 %v50, 8
    %v91 = vmul.u32.u64.compose %v90, %v89
    %v92 = vextract.low.u32 %v91
    %v93 = vextract.high.u32 %v91
    %v94 = vmul.u32.u64.compose %v90, %v85
    %v95 = vextract.low.u32 %v94
    %v96 = vextract.high.u32 %v94
    %v97 = vmul.u32 %v90, %v81
    %v98 = vadd.s32 %v93, %v95
    %vm99 = vc.u32 %v93, %v95
    %v100 = vadd.s32 %v96, 1
    %v101 = vsel %vm99, %v100, %v96
    %v102 = vadd.s32 %v97, %v101
    %v103 = vadd.s32 %v102, 536870912
    %v104 = vshrl.u32 %v103, 30
    %v105 = vshll.u32 %v104, 30
    %v106 = vsub.s32 %v102, %v105
    %vm107 = vcmp.lt.s32.totalorder %v106, 0
    %v108 = vsub.s32 0, %v106
    %v109 = vsel %vm107, %v108, %v106
    %v110 = vclz %v109
    %v111 = vsub.s32 %v110, 2
    %vm112 = vcmp.gt.s32.totalorder 0, %v111
    %v113 = vsel %vm112, 0, %v111
    %v114 = vsub.s32 32, %v113
    %v115 = vshll.u32 %v106, %v113
    %v116 = vshrl.u32 %v98, %v114
    %v117 = vor.u32 %v115, %v116
    %v118 = vsub.s32 4294967266, %v113
    %v119 = vadd.s32 %v118, 127
    %v120 = vshll.u32 %v119, 23
    %v121 = vor.u32 4788187, %v120
    %v122 = vand.u32 2147483647, %v121
    %v124 = vcvt.s32.f32 %v117
    %v125 = vmul.f32 %v124, %v122
    %v126 = vxor.u32 %v125, 2147483648
    %v127 = vsel %vm44, %v126, %v125
    %v128 = vsub.s32 4, %v104
    %v129 = vsel %vm44, %v128, %v104
    %v130 = vsel %vm43, %v41, %v127
    %v131 = vsel %vm43, 0, %v129
    %v132 = vcosq.f32.pop %v130
    %v133 = vsinq.f32.pop %v130
    %vm134 = vweird.f32 %v41
    %v135 = vand.u32 %v131, 3
    %vm136 = vcmp.lt.s32.totalorder %v135, 2
    %vm137 = vcmp.eq.s32.totalorder %v135, 0
    %v138 = vxor.u32 %v133, 2147483648
    %v139 = vsel %vm137, %v132, %v138
    %vm140 = vcmp.eq.s32.totalorder %v135, 2
    %v141 = vxor.u32 %v132, 2147483648
    %v142 = vsel %vm140, %v141, %v133
    %v143 = vsel %vm136, %v139, %v142
    %v144 = vsel %vm134, nan, %v143
    %v145 = vand.u32 2147483647, %v41
    %vm146 = vcmp.le.f32.partialorder %v145, 0.7853982
    %vm147 = vcmp.lt.s32.totalorder %v41, 0
    %v148 = vand.u32 %v41, 2139095040
    %v149 = vshrl.u32 %v148, 23
    %v150 = vsub.s32 %v149, 127
    %v151 = vand.u32 2147483647, %v41
    %v152 = vand.u32 %v151, 8388607
    %v153 = vor.u32 %v152, 8388608
    %v154 = vsub.s32 0, %v153
    %v155 = vadd.s32 %v150, 1
    %vm156 = vcmp.gt.s32.totalorder %v155, 0
    %v157 = vsel %vm156, %v155, 0
    %v158 = vshrl.u32 %v157, 5
    %v159 = vand.u32 %v157, 31
    %v160 = vsub.s32 32, %v159
    %v161 = vshrl.u32 683565275, %v160
    %v162 = vshll.u32 683565275, %v159
    %v163 = vshrl.u32 2475754826, %v160
    %v164 = vor.u32 %v162, %v163
    %v165 = vshll.u32 2475754826, %v159
    %v166 = vshrl.u32 2131351028, %v160
    %v167 = vor.u32 %v165, %v166
    %v168 = vshll.u32 2131351028, %v159
    %v169 = vshrl.u32 2102212464, %v160
    %v170 = vor.u32 %v168, %v169
    %v171 = vshll.u32 2102212464, %v159
    %v172 = vshrl.u32 920167782, %v160
    %v173 = vor.u32 %v171, %v172
    %v174 = vshll.u32 920167782, %v159
    %v175 = vshrl.u32 1326507024, %v160
    %v176 = vor.u32 %v174, %v175
    %vm177 = vcmp.lt.s32.totalorder %v158, 1
    %vm178 = vcmp.lt.s32.totalorder %v158, 2
    %vm179 = vcmp.lt.s32.totalorder %v158, 3
    %vm180 = vcmp.lt.s32.totalorder %v158, 4
    %v181 = vsel %vm177, %v161, %v164
    %v182 = vsel %vm180, %v170, 2102212464
    %v183 = vsel %vm179, %v167, %v182
    %v184 = vsel %vm178, %v181, %v183
    %v185 = vsel %vm177, %v164, %v167
    %v186 = vsel %vm180, %v173, 920167782
    %v187 = vsel %vm179, %v170, %v186
    %v188 = vsel %vm178, %v185, %v187
    %v189 = vsel %vm177, %v167, %v170
    %v190 = vsel %vm180, %v176, 1326507024
    %v191 = vsel %vm179, %v173, %v190
    %v192 = vsel %vm178, %v189, %v191
    %v193 = vshll.u32 %v153, 8
    %v194 = vmul.u32.u64.compose %v193, %v192
    %v195 = vextract.low.u32 %v194
    %v196 = vextract.high.u32 %v194
    %v197 = vmul.u32.u64.compose %v193, %v188
    %v198 = vextract.low.u32 %v197
    %v199 = vextract.high.u32 %v197
    %v200 = vmul.u32 %v193, %v184
    %v201 = vadd.s32 %v196, %v198
    %vm202 = vc.u32 %v196, %v198
    %v203 = vadd.s32 %v199, 1
    %v204 = vsel %vm202, %v203, %v199
    %v205 = vadd.s32 %v200, %v204
    %v206 = vadd.s32 %v205, 536870912
    %v207 = vshrl.u32 %v206, 30
    %v208 = vshll.u32 %v207, 30
    %v209 = vsub.s32 %v205, %v208
    %vm210 = vcmp.lt.s32.totalorder %v209, 0
    %v211 = vsub.s32 0, %v209
    %v212 = vsel %vm210, %v211, %v209
    %v213 = vclz %v212
    %v214 = vsub.s32 %v213, 2
    %vm215 = vcmp.gt.s32.totalorder 0, %v214
    %v216 = vsel %vm215, 0, %v214
    %v217 = vsub.s32 32, %v216
    %v218 = vshll.u32 %v209, %v216
    %v219 = vshrl.u32 %v201, %v217
    %v220 = vor.u32 %v218, %v219
    %v221 = vsub.s32 4294967266, %v216
    %v222 = vadd.s32 %v221, 127
    %v223 = vshll.u32 %v222, 23
    %v224 = vor.u32 4788187, %v223
    %v225 = vand.u32 2147483647, %v224
    %v227 = vcvt.s32.f32 %v220
    %v228 = vmul.f32 %v227, %v225
    %v229 = vxor.u32 %v228, 2147483648
    %v230 = vsel %vm147, %v229, %v228
    %v231 = vsub.s32 4, %v207
    %v232 = vsel %vm147, %v231, %v207
    %v233 = vsel %vm146, %v41, %v230
    %v234 = vsel %vm146, 0, %v232
    %v235 = vcosq.f32.pop %v233
    %v236 = vsinq.f32.pop %v233
    %vm237 = vweird.f32 %v41
    %v238 = vadd.s32 %v234, 3
    %v239 = vand.u32 %v238, 3
    %vm240 = vcmp.lt.s32.totalorder %v239, 2
    %vm241 = vcmp.eq.s32.totalorder %v239, 0
    %v242 = vxor.u32 %v236, 2147483648
    %v243 = vsel %vm241, %v235, %v242
    %vm244 = vcmp.eq.s32.totalorder %v239, 2
    %v245 = vxor.u32 %v235, 2147483648
    %v246 = vsel %vm244, %v245, %v236
    %v247 = vsel %vm240, %v243, %v246
    %v248 = vsel %vm237, nan, %v247
    %250 = vrot.lane.b32.xlu0 %v248, 1
    %v251 = vpop.permute.xlu0 %250
    %vm253 = vcmask 7168
    %v254 = vsel %vm253, %v41, %v144
    %vm255 = vcmask 15360
    %v256 = vsel %vm255, %v254, %v251
    %258 = vrot.lane.b32.xlu0 %v41, 1
    %v259 = vpop.permute.xlu0 %258
    %vm261 = vcmask 23552
    %v262 = vsel %vm261, %v256, %v259
    %vm263 = vcmask 39936
    %v264 = vsel %vm263, %v262, %v259
    %v265 = vld [vmem:[#allocation5] sm:$0x3f]
    %v266 = vld [vmem:[%s2] sm:$0x1]
    %v268 = vlaneseq
    %v269 = vshrl.u32 %v268, 7
    %v270 = vsub.s32 0, %v269
    %v271 = vrot.slane %v266, %v270
    %vm273 = vcmask 48128
    %v275 = vsel %vm273, %v264, 0
    %vm277 = vcmask 1045504
    %v279 = vsel %vm277, %v265, 0
    %281 = vmatprep.subr.mxu0 0.0
    %282 = vmatpush1.msra.mxu0 0.0
    %283 = vmatprep.subr.mxu0 0.0
    %284 = vmatpush1.msra.mxu0 0.0
    %285 = vmatprep.subr.mxu0 0.0
    %286 = vmatpush1.msra.mxu0 0.0
    %287 = vmatprep.subr.mxu0 0.0
    %288 = vmatpush1.msra.mxu0 0.0
    %289 = vmatprep.subr.mxu0 0.0
    %290 = vmatpush1.msra.mxu0 0.0
    %291 = vmatprep.subr.mxu0 0.0
    %292 = vmatpush1.msra.mxu0 0.0
    %293 = vmatprep.subr.mxu0 0.0
    %294 = vmatpush1.msra.mxu0 0.0
    %295 = vmatprep.subr.mxu0 0.0
    %296 = vmatpush1.msra.mxu0 0.0
    %297 = vmatprep.subr.mxu0 0.0
    %298 = vmatpush1.msra.mxu0 0.0
    %299 = vmatprep.subr.mxu0 0.0
    %300 = vmatpush1.msra.mxu0 0.0
    %301 = vmatprep.subr.mxu0 0.0
    %302 = vmatpush1.msra.mxu0 0.0
    %303 = vmatprep.subr.mxu0 0.0
    %304 = vmatpush1.msra.mxu0 0.0
    %305 = vmatprep.subr.mxu0 0.0
    %306 = vmatpush1.msra.mxu0 0.0
    %307 = vmatprep.subr.mxu0 0.0
    %308 = vmatpush1.msra.mxu0 0.0
    %309 = vmatprep.subr.mxu0 0.0
    %310 = vmatpush1.msra.mxu0 0.0
    %311 = vmatprep.subr.mxu0 0.0
    %312 = vmatpush1.msra.mxu0 %v279
    %313 = vmatprep.subr.mxu0 0.0
    %314 = vmatpush2.msra.mxu0 0.0
    %315 = vmatprep.subr.mxu0 0.0
    %316 = vmatpush2.msra.mxu0 0.0
    %317 = vmatprep.subr.mxu0 0.0
    %318 = vmatpush2.msra.mxu0 0.0
    %319 = vmatprep.subr.mxu0 0.0
    %320 = vmatpush2.msra.mxu0 0.0
    %321 = vmatprep.subr.mxu0 0.0
    %322 = vmatpush2.msra.mxu0 0.0
    %323 = vmatprep.subr.mxu0 0.0
    %324 = vmatpush2.msra.mxu0 0.0
    %325 = vmatprep.subr.mxu0 0.0
    %326 = vmatpush2.msra.mxu0 0.0
    %327 = vmatprep.subr.mxu0 0.0
    %328 = vmatpush2.msra.mxu0 0.0
    %329 = vmatprep.subr.mxu0 0.0
    %330 = vmatpush2.msra.mxu0 0.0
    %331 = vmatprep.subr.mxu0 0.0
    %332 = vmatpush2.msra.mxu0 0.0
    %333 = vmatprep.subr.mxu0 0.0
    %334 = vmatpush2.msra.mxu0 0.0
    %335 = vmatprep.subr.mxu0 0.0
    %336 = vmatpush2.msra.mxu0 0.0
    %337 = vmatprep.subr.mxu0 0.0
    %338 = vmatpush2.msra.mxu0 0.0
    %339 = vmatprep.subr.mxu0 0.0
    %340 = vmatpush2.msra.mxu0 0.0
    %341 = vmatprep.subr.mxu0 0.0
    %342 = vmatpush2.msra.mxu0 0.0
    %343 = vmatprep.subr.mxu0 0.0
    %344 = vmatpush2.msra.mxu0 0.0
    %345 = vmatprep.mubr.f32.mxu0 0.0
    %346 = vmatmul.mubr.f32.gmra.mxu0 %v275
    %v347 = vpop.f32.mrf.mxu0
    %v348 = vadd.f32 %v271, %v347
    %v349 = vpop.f32.mrf.mxu0
    %350 = vdwg.mxu0
    %v351 = vtanh.pop %v348
    %v352 = vld [vmem:[#allocation5] sm:$0xff]
    %v353 = vld [vmem:[#allocation5 + $0x8] sm:$0xff]
    %v354 = vld [vmem:[#allocation5 + $0x10] sm:$0xff]
    %v355 = vld [vmem:[#allocation5 + $0x18] sm:$0xff]
    %360 = vrot.lane.b32.xlu0 %v352, 96
    %v361 = vpop.permute.xlu0 %360
    %362 = vrot.lane.b32.xlu0 %v353, 96
    %v363 = vpop.permute.xlu0 %362
    %364 = vrot.lane.b32.xlu0 %v354, 96
    %v365 = vpop.permute.xlu0 %364
    %366 = vrot.lane.b32.xlu0 %v355, 96
    %v367 = vpop.permute.xlu0 %366
    %372 = vrot.lane.b32.xlu0 %v271, 96
    %v373 = vpop.permute.xlu0 %372
    %vm375 = vcmask 261120
    %v377 = vsel %vm375, %v351, 0
    %379 = vmatprep.subr.mxu0 0.0
    %380 = vmatpush1.msra.mxu0 0.0
    %381 = vmatprep.subr.mxu0 0.0
    %382 = vmatpush1.msra.mxu0 0.0
    %383 = vmatprep.subr.mxu0 0.0
    %384 = vmatpush1.msra.mxu0 0.0
    %385 = vmatprep.subr.mxu0 0.0
    %386 = vmatpush1.msra.mxu0 0.0
    %387 = vmatprep.subr.mxu0 0.0
    %388 = vmatpush1.msra.mxu0 0.0
    %389 = vmatprep.subr.mxu0 0.0
    %390 = vmatpush1.msra.mxu0 0.0
    %391 = vmatprep.subr.mxu0 0.0
    %392 = vmatpush1.msra.mxu0 0.0
    %393 = vmatprep.subr.mxu0 0.0
    %394 = vmatpush1.msra.mxu0 0.0
    %395 = vmatprep.subr.mxu0 0.0
    %396 = vmatpush1.msra.mxu0 0.0
    %397 = vmatprep.subr.mxu0 0.0
    %398 = vmatpush1.msra.mxu0 0.0
    %399 = vmatprep.subr.mxu0 0.0
    %400 = vmatpush1.msra.mxu0 0.0
    %401 = vmatprep.subr.mxu0 0.0
    %402 = vmatpush1.msra.mxu0 0.0
    %403 = vmatprep.subr.mxu0 0.0
    %404 = vmatpush1.msra.mxu0 %v367
    %405 = vmatprep.subr.mxu0 0.0
    %406 = vmatpush1.msra.mxu0 %v365
    %407 = vmatprep.subr.mxu0 0.0
    %408 = vmatpush1.msra.mxu0 %v363
    %409 = vmatprep.subr.mxu0 0.0
    %410 = vmatpush1.msra.mxu0 %v361
    %411 = vmatprep.subr.mxu0 0.0
    %412 = vmatpush2.msra.mxu0 0.0
    %413 = vmatprep.subr.mxu0 0.0
    %414 = vmatpush2.msra.mxu0 0.0
    %415 = vmatprep.subr.mxu0 0.0
    %416 = vmatpush2.msra.mxu0 0.0
    %417 = vmatprep.subr.mxu0 0.0
    %418 = vmatpush2.msra.mxu0 0.0
    %419 = vmatprep.subr.mxu0 0.0
    %420 = vmatpush2.msra.mxu0 0.0
    %421 = vmatprep.subr.mxu0 0.0
    %422 = vmatpush2.msra.mxu0 0.0
    %423 = vmatprep.subr.mxu0 0.0
    %424 = vmatpush2.msra.mxu0 0.0
    %425 = vmatprep.subr.mxu0 0.0
    %426 = vmatpush2.msra.mxu0 0.0
    %427 = vmatprep.subr.mxu0 0.0
    %428 = vmatpush2.msra.mxu0 0.0
    %429 = vmatprep.subr.mxu0 0.0
    %430 = vmatpush2.msra.mxu0 0.0
    %431 = vmatprep.subr.mxu0 0.0
    %432 = vmatpush2.msra.mxu0 0.0
    %433 = vmatprep.subr.mxu0 0.0
    %434 = vmatpush2.msra.mxu0 0.0
    %435 = vmatprep.subr.mxu0 0.0
    %436 = vmatpush2.msra.mxu0 0.0
    %437 = vmatprep.subr.mxu0 0.0
    %438 = vmatpush2.msra.mxu0 0.0
    %439 = vmatprep.subr.mxu0 0.0
    %440 = vmatpush2.msra.mxu0 0.0
    %441 = vmatprep.subr.mxu0 0.0
    %442 = vmatpush2.msra.mxu0 0.0
    %443 = vmatprep.mubr.f32.mxu0 0.0
    %444 = vmatmul.mubr.f32.gmra.mxu0 %v377
    %v445 = vpop.f32.mrf.mxu0
    %v446 = vadd.f32 %v373, %v445
    %v447 = vpop.f32.mrf.mxu0
    %448 = vdwg.mxu0
    %v449 = vtanh.pop %v446
    %450 = vrot.lane.b32.xlu0 %v352, 64
    %v451 = vpop.permute.xlu0 %450
    %452 = vrot.lane.b32.xlu0 %v353, 64
    %v453 = vpop.permute.xlu0 %452
    %454 = vrot.lane.b32.xlu0 %v354, 64
    %v455 = vpop.permute.xlu0 %454
    %456 = vrot.lane.b32.xlu0 %v355, 64
    %v457 = vpop.permute.xlu0 %456
    %462 = vrot.lane.b32.xlu0 %v271, 64
    %v463 = vpop.permute.xlu0 %462
    %v466 = vsel %vm375, %v449, 0
    %468 = vmatprep.subr.mxu0 0.0
    %469 = vmatpush1.msra.mxu0 0.0
    %470 = vmatprep.subr.mxu0 0.0
    %471 = vmatpush1.msra.mxu0 0.0
    %472 = vmatprep.subr.mxu0 0.0
    %473 = vmatpush1.msra.mxu0 0.0
    %474 = vmatprep.subr.mxu0 0.0
    %475 = vmatpush1.msra.mxu0 0.0
    %476 = vmatprep.subr.mxu0 0.0
    %477 = vmatpush1.msra.mxu0 0.0
    %478 = vmatprep.subr.mxu0 0.0
    %479 = vmatpush1.msra.mxu0 0.0
    %480 = vmatprep.subr.mxu0 0.0
    %481 = vmatpush1.msra.mxu0 0.0
    %482 = vmatprep.subr.mxu0 0.0
    %483 = vmatpush1.msra.mxu0 0.0
    %484 = vmatprep.subr.mxu0 0.0
    %485 = vmatpush1.msra.mxu0 0.0
    %486 = vmatprep.subr.mxu0 0.0
    %487 = vmatpush1.msra.mxu0 0.0
    %488 = vmatprep.subr.mxu0 0.0
    %489 = vmatpush1.msra.mxu0 0.0
    %490 = vmatprep.subr.mxu0 0.0
    %491 = vmatpush1.msra.mxu0 0.0
    %492 = vmatprep.subr.mxu0 0.0
    %493 = vmatpush1.msra.mxu0 %v457
    %494 = vmatprep.subr.mxu0 0.0
    %495 = vmatpush1.msra.mxu0 %v455
    %496 = vmatprep.subr.mxu0 0.0
    %497 = vmatpush1.msra.mxu0 %v453
    %498 = vmatprep.subr.mxu0 0.0
    %499 = vmatpush1.msra.mxu0 %v451
    %500 = vmatprep.subr.mxu0 0.0
    %501 = vmatpush2.msra.mxu0 0.0
    %502 = vmatprep.subr.mxu0 0.0
    %503 = vmatpush2.msra.mxu0 0.0
    %504 = vmatprep.subr.mxu0 0.0
    %505 = vmatpush2.msra.mxu0 0.0
    %506 = vmatprep.subr.mxu0 0.0
    %507 = vmatpush2.msra.mxu0 0.0
    %508 = vmatprep.subr.mxu0 0.0
    %509 = vmatpush2.msra.mxu0 0.0
    %510 = vmatprep.subr.mxu0 0.0
    %511 = vmatpush2.msra.mxu0 0.0
    %512 = vmatprep.subr.mxu0 0.0
    %513 = vmatpush2.msra.mxu0 0.0
    %514 = vmatprep.subr.mxu0 0.0
    %515 = vmatpush2.msra.mxu0 0.0
    %516 = vmatprep.subr.mxu0 0.0
    %517 = vmatpush2.msra.mxu0 0.0
    %518 = vmatprep.subr.mxu0 0.0
    %519 = vmatpush2.msra.mxu0 0.0
    %520 = vmatprep.subr.mxu0 0.0
    %521 = vmatpush2.msra.mxu0 0.0
    %522 = vmatprep.subr.mxu0 0.0
    %523 = vmatpush2.msra.mxu0 0.0
    %524 = vmatprep.subr.mxu0 0.0
    %525 = vmatpush2.msra.mxu0 0.0
    %526 = vmatprep.subr.mxu0 0.0
    %527 = vmatpush2.msra.mxu0 0.0
    %528 = vmatprep.subr.mxu0 0.0
    %529 = vmatpush2.msra.mxu0 0.0
    %530 = vmatprep.subr.mxu0 0.0
    %531 = vmatpush2.msra.mxu0 0.0
    %532 = vmatprep.mubr.f32.mxu0 0.0
    %533 = vmatmul.mubr.f32.gmra.mxu0 %v466
    %v534 = vpop.f32.mrf.mxu0
    %v535 = vadd.f32 %v463, %v534
    %v536 = vpop.f32.mrf.mxu0
    %537 = vdwg.mxu0
    %538 = vrot.lane.b32.xlu0 %v41, 126
    %v539 = vpop.permute.xlu0 %538
    %542 = vrot.lane.b32.xlu0 %v535, 2
    %v543 = vpop.permute.xlu0 %542
    %v545 = vsel %vm255, %v539, %v543
    %vm546 = vcmask 31744
    %v547 = vsel %vm546, %v545, 0.0
    %548 = vst.msk [vmem:[#allocation7] sm:$0xff] %vm273, %v547
    // Predicated region
    $region22: #{tpu_custom_call.1} parent=1 // pred_check
      _
    $region23: #{tpu_custom_call.1} parent=1 // pred_check_branch
      %550 = sbr.rel (0) target = $region25
    $region24: #{tpu_custom_call.1} parent=1 // pred_region
      %s552 = ssub.s32 128, 128
      %553 = vsyncadd [#allocation4], %s552
      %s555 = sshll.u32 [#allocation7], 4
      %s556 = int_to_ptr.vmem [resolvable:$true] %s555
      %558 = dma.vmem_to_hbm [thread:$0]  %s556, 128, %s3, [#allocation4]
    $region25: #{tpu_custom_call.1} parent=1 // pred_fallthru
      _
    // Predicated region
    $region26: #{tpu_custom_call.1} parent=1 // pred_check
      _
    $region27: #{tpu_custom_call.1} parent=1 // pred_check_branch
      %560 = sbr.rel (0) target = $region29
    $region28: #{tpu_custom_call.1} parent=1 // pred_region
      %561 = dma.done [#allocation4], 128
    $region29: #{tpu_custom_call.1} parent=1 // pred_fallthru
      _
    %562 = vsyncpa [#allocation3], 1
    %563 = vsyncpa [#allocation6], 1
    %564 = vsyncpa [#allocation4], 1

</llo_original>
